<compile_context>
chip_gen: v7x
topology: tpu7x:2x2x1
jax: 0.10.0
libtpu: 0.0.40
codegen_flags: <defaults>
</compile_context>

<pallas_src>
import jax
import jax.numpy as jnp
import numpy as np
from jax import lax
from jax.experimental import pallas as pl
from jax.experimental.pallas import tpu as pltpu

_NEG_INF = -1e30                       # finite "-inf" for the DP and padded vocab bias
_VMEM_LIMIT_BYTES = 48 * 1024 * 1024   # fits v7x (64 MiB phys) and v5e/v6e (128 MiB phys)
_PROJ_VMEM_BUDGET = 12 * 1024 * 1024   # target double-buffered working set, projection
_DP_EMIT_BUDGET = 8 * 1024 * 1024      # target double-buffered emit slab, alpha DP


def _round_up(x, m):
    return ((x + m - 1) // m) * m


# ----------------------------------------------------------------------------
# Pallas kernel 1: fused linear projection (bf16 MXU, f32 accumulate)
#   + online row-wise logsumexp over vocab tiles (VMEM scratch)
#   + CTC emission log-probs  emit = x @ W[:, ext] + b[ext] - lse
# Grid: (batch, time-tiles, vocab-tiles); vocab axis is the "arbitrary"
# reduction axis for the lse accumulator; emit is written at the last vocab
# tile only (flash-attention-style finalize).
# ----------------------------------------------------------------------------
def _proj_emit_kernel(x_ref, w_ref, b_ref, wext_ref, bext_ref,
                      ys_ref, emit_ref, m_scr, l_scr):
    oc = pl.program_id(2)
    noc = pl.num_programs(2)

    x = x_ref[...]                                            # (tt, D) bf16
    logits = jnp.dot(x, w_ref[...], preferred_element_type=jnp.float32)
    logits = logits + b_ref[...]                              # (tt, toc) f32; padded cols ~= -1e30
    ys_ref[...] = logits.astype(ys_ref.dtype)                 # bf16 store (halves writeback)

    tile_max = jnp.max(logits, axis=-1, keepdims=True)        # (tt, 1)

    @pl.when(oc == 0)
    def _():
        m_scr[...] = jnp.full_like(m_scr, -jnp.inf)
        l_scr[...] = jnp.zeros_like(l_scr)

    m_prev = m_scr[...]
    m_new = jnp.maximum(m_prev, tile_max)
    l_scr[...] = (l_scr[...] * jnp.exp(m_prev - m_new)
                  + jnp.sum(jnp.exp(logits - m_new), axis=-1, keepdims=True))
    m_scr[...] = m_new

    @pl.when(oc == noc - 1)
    def _():
        lse = m_scr[...] + jnp.log(l_scr[...])                # (tt, 1)
        # Gathered-weight matmul == gathering the logits at the extended labels,
        # but never re-reads the (T,B,C) logits from HBM.
        e = jnp.dot(x, wext_ref[0], preferred_element_type=jnp.float32)
        e = e + bext_ref[0]                                   # (tt, S_pad)
        emit_ref[...] = (e - lse).astype(emit_ref.dtype)


def project_and_emit(hs_pad, w, b, ext, *, out_dtype=jnp.bfloat16):
    """hs_pad: (B,T,D); w: (D,odim); b: (1,odim) or (odim,); ext: (B,S_pad) int32.

    Returns (ys_hat (T,B,odim) out_dtype, emit (T_pad,B,S_pad) f32 log-softmax
    at the extended labels).  Padded frames of emit are inert for the DP.
    """
    B, T, D = hs_pad.shape
    odim = w.shape[1]
    S_pad = ext.shape[1]
    odim_pad = _round_up(odim, 128)

    # Vocab tile (lane-dense, multiple of 128, divides odim_pad).
    toc = 128
    for cand in (512, 256, 128):
        if odim_pad % cand == 0:
            toc = cand
            break
    noc = odim_pad // toc

    # Row (time) tile: as large as the VMEM budget allows (double buffering
    # of x / ys / emit blocks plus the resident weight blocks).
    fixed = 2 * (D * toc * 2 + D * S_pad * 2 + toc * 4 + S_pad * 4)
    per_row = 2 * (D * 2 + toc * 2 + S_pad * 4)
    avail = max(_PROJ_VMEM_BUDGET - fixed, 8 * per_row)
    tt = min(256, avail // per_row, _round_up(T, 8))
    tt = max(8, (tt // 8) * 8)
    T_pad = _round_up(T, tt)
    nt = T_pad // tt

    # Pad weights/bias along vocab; padded bias = -1e30 so the lse ignores the
    # padding without any in-kernel masking.
    b_vec = jnp.reshape(b, (-1,)).astype(jnp.float32)
    w_p = jnp.zeros((D, odim_pad), jnp.bfloat16).at[:, :odim].set(w.astype(jnp.bfloat16))
    b_p = jnp.full((1, odim_pad), _NEG_INF, jnp.float32).at[0, :odim].set(b_vec)

    # Per-batch gathered weight/bias columns for the extended CTC labels
    # (tiny: B*D*S_pad*2 bytes, built once in XLA).
    w_ext = jnp.transpose(jnp.take(w_p, ext, axis=1), (1, 0, 2))      # (B, D, S_pad) bf16
    b_ext = jnp.take(b_p[0], ext, axis=0).reshape(B, 1, S_pad)        # (B, 1, S_pad) f32

    # (B,T,D) -> (B*T_pad, D) view; no transpose of the activations.
    x = hs_pad.astype(jnp.bfloat16)
    if T_pad != T:
        x = jnp.pad(x, ((0, 0), (0, T_pad - T), (0, 0)))
    x2d = x.reshape(B * T_pad, D)

    itemsize = jnp.dtype(out_dtype).itemsize
    cost = pl.CostEstimate(
        flops=2 * B * T_pad * D * (odim_pad + S_pad),
        transcendentals=B * T_pad * odim_pad,
        bytes_accessed=(B * T_pad * D * 2 + D * odim_pad * 2 + B * D * S_pad * 2
                        + B * T_pad * odim_pad * itemsize + B * T_pad * S_pad * 4),
    )

    ys2d, emit2d = pl.pallas_call(
        _proj_emit_kernel,
        out_shape=(
            jax.ShapeDtypeStruct((T_pad, B * odim_pad), out_dtype),
            jax.ShapeDtypeStruct((T_pad, B * S_pad), jnp.float32),
        ),
        grid_spec=pltpu.PrefetchScalarGridSpec(
            num_scalar_prefetch=0,
            grid=(B, nt, noc),
            in_specs=[
                pl.BlockSpec((tt, D), lambda bb, ti, oc: (bb * nt + ti, 0)),
                pl.BlockSpec((D, toc), lambda bb, ti, oc: (0, oc)),
                pl.BlockSpec((1, toc), lambda bb, ti, oc: (0, oc)),
                pl.BlockSpec((1, D, S_pad), lambda bb, ti, oc: (bb, 0, 0)),
                pl.BlockSpec((1, 1, S_pad), lambda bb, ti, oc: (bb, 0, 0)),
            ],
            out_specs=[
                pl.BlockSpec((tt, toc), lambda bb, ti, oc: (ti, bb * noc + oc)),
                pl.BlockSpec((tt, S_pad), lambda bb, ti, oc: (ti, bb)),
            ],
            scratch_shapes=[
                pltpu.VMEM((tt, 1), jnp.float32),   # running row max
                pltpu.VMEM((tt, 1), jnp.float32),   # running row sum-exp
            ],
        ),
        compiler_params=pltpu.CompilerParams(
            dimension_semantics=("parallel", "parallel", "arbitrary"),
            vmem_limit_bytes=_VMEM_LIMIT_BYTES),
        cost_estimate=cost,
    )(x2d, w_p, b_p, w_ext, b_ext)

    ys_hat = ys2d.reshape(T_pad, B, odim_pad)[:T, :, :odim]    # (T, B, odim)
    emit = emit2d.reshape(T_pad, B, S_pad)                     # (T_pad, B, S_pad)
    return ys_hat, emit


# ----------------------------------------------------------------------------
# Pallas kernel 2: CTC forward (alpha) dynamic program.
# Grid: (batch-tiles "parallel", time-chunks "arbitrary").  The (tb, S_pad)
# alpha state stays resident in the output VMEM block across all time chunks;
# a chunk of timesteps is processed per grid step with lax.fori_loop.  The
# s-1 / s-2 shifts run on the XLU via pltpu.roll (wrapped lanes are killed by
# the mask1 / skip_ok masks).
# ----------------------------------------------------------------------------
def _ctc_alpha_kernel(ilens_ref, valid_ref, skip_ref, init_ref, emit_ref, alpha_ref):
    c = pl.program_id(1)
    tchunk = emit_ref.shape[0]
    tb, s_sz = alpha_ref.shape
    neginf = jnp.float32(_NEG_INF)

    valid = valid_ref[...] > 0.5        # (tb, S_pad)
    skip_ok = skip_ref[...] > 0.5       # (tb, S_pad)
    ilens = ilens_ref[...]              # (tb, 1) int32

    s_ids = lax.broadcasted_iota(jnp.int32, (tb, s_sz), 1)
    mask1 = s_ids >= 1

    def step(l, alpha):
        t = c * tchunk + l
        a1 = jnp.where(mask1, pltpu.roll(alpha, shift=1, axis=1), neginf)
        a2 = jnp.where(skip_ok, pltpu.roll(alpha, shift=2, axis=1), neginf)
        mx = jnp.maximum(alpha, jnp.maximum(a1, a2))
        new = mx + jnp.log(jnp.exp(alpha - mx) + jnp.exp(a1 - mx) + jnp.exp(a2 - mx))
        new = new + emit_ref[l]
        new = jnp.where(valid, new, neginf)
        # Frames past the per-utterance input length leave alpha untouched.
        return jnp.where(t < ilens, new, alpha)

    @pl.when(c == 0)
    def _():
        alpha0 = jnp.where(init_ref[...] > 0.5, emit_ref[0], neginf)
        alpha_ref[...] = lax.fori_loop(1, tchunk, step, alpha0)

    @pl.when(c > 0)
    def _():
        alpha_ref[...] = lax.fori_loop(0, tchunk, step, alpha_ref[...])


def _ctc_loss_from_emit(emit, hlens, olens, valid_f, skip_f, init_f):
    """emit: (T_e, B, S_pad) log-softmax at extended labels.  Returns summed loss."""
    T_e, B, S_pad = emit.shape

    tb = 8 if (B % 8 == 0) else B       # batch tile (parallel across v7x cores)
    nb = B // tb

    # VMEM-aware time chunk: double-buffered emit slab stays within budget.
    per_t = 2 * tb * S_pad * 4
    tchunk = min(256, max(8, _DP_EMIT_BUDGET // per_t))
    tchunk = max(8, (tchunk // 8) * 8)
    tchunk = min(tchunk, _round_up(T_e, 8))
    T_pad = _round_up(T_e, tchunk)
    if T_pad != T_e:
        emit = jnp.pad(emit, ((0, T_pad - T_e), (0, 0), (0, 0)))

    ilens = hlens.astype(jnp.int32).reshape(B, 1)

    alpha = pl.pallas_call(
        _ctc_alpha_kernel,
        out_shape=jax.ShapeDtypeStruct((B, S_pad), jnp.float32),
        grid_spec=pltpu.PrefetchScalarGridSpec(
            num_scalar_prefetch=0,
            grid=(nb, T_pad // tchunk),
            in_specs=[
                pl.BlockSpec((tb, 1), lambda bi, c: (bi, 0)),
                pl.BlockSpec((tb, S_pad), lambda bi, c: (bi, 0)),
                pl.BlockSpec((tb, S_pad), lambda bi, c: (bi, 0)),
                pl.BlockSpec((tb, S_pad), lambda bi, c: (bi, 0)),
                pl.BlockSpec((tchunk, tb, S_pad), lambda bi, c: (c, bi, 0)),
            ],
            out_specs=pl.BlockSpec((tb, S_pad), lambda bi, c: (bi, 0)),
        ),
        compiler_params=pltpu.CompilerParams(
            dimension_semantics=("parallel", "arbitrary"),
            vmem_limit_bytes=_VMEM_LIMIT_BYTES),
    )(ilens, valid_f, skip_f, init_f, emit)

    neginf = jnp.float32(_NEG_INF)
    has_label = olens > 0
    end_blank = 2 * olens
    end_label = jnp.maximum(2 * olens - 1, 0)
    a_blank = jnp.take_along_axis(alpha, end_blank[:, None], axis=1)[:, 0]
    a_label = jnp.take_along_axis(alpha, end_label[:, None], axis=1)[:, 0]
    a_label = jnp.where(has_label, a_label, neginf)
    loglik = jnp.logaddexp(a_blank, a_label)
    loss_b = -loglik
    # zero_infinity=True; threshold derived from _NEG_INF (no magic-number coupling).
    loss_b = jnp.where(jnp.isfinite(loss_b) & (loss_b < -0.5 * _NEG_INF), loss_b, 0.0)
    # TODO(synk): hlens[b] == 0 still applies emit[0] at init (harmless for real data).
    return jnp.sum(loss_b)


# ----------------------------------------------------------------------------
# CTC.forward equivalent
# ----------------------------------------------------------------------------
def ctc_forward(hs_pad, hlens, ys_pad, w, b, *, blank=0, logits_dtype=jnp.bfloat16):
    """hs_pad: (B,T,eprojs), hlens: (B,), ys_pad: (B,Lmax) with -1 padding.

    Returns (loss, ys_hat) where ys_hat is (T, B, odim) raw logits, matching
    `self.ctc_lo(self.dropout(hs_pad)).transpose(0, 1)`.
    """
    B, T, _ = hs_pad.shape
    Lmax = ys_pad.shape[1]
    S_pad = _round_up(2 * Lmax + 1, 128)      # lane-dense CTC state axis

    # Dropout treated as identity (eval mode).
    # TODO(synk): train-mode dropout via pltpu.prng_seed/prng_random_bits.

    # Extended (blank-interleaved) labels and DP masks (tiny, XLA).
    tgt = jnp.where(ys_pad < 0, blank, ys_pad).astype(jnp.int32)      # ignore_id = -1
    ext = jnp.full((B, S_pad), blank, jnp.int32)
    if Lmax > 0:
        ext = ext.at[:, 1:2 * Lmax:2].set(tgt)
    olens = jnp.sum(ys_pad != -1, axis=1).astype(jnp.int32)
    has_label = olens > 0
    s_idx = jnp.arange(S_pad)
    valid = s_idx[None, :] < (2 * olens[:, None] + 1)
    ext_m2 = jnp.concatenate(
        [jnp.full((B, 2), blank, jnp.int32), ext[:, :-2]], axis=1)
    allow_skip = (s_idx[None, :] >= 2) & (ext != blank) & (ext != ext_m2)
    init_mask = (s_idx[None, :] == 0) | ((s_idx[None, :] == 1) & has_label[:, None])

    # Fused projection + log-softmax emission gather (Pallas).
    ys_hat, emit = project_and_emit(hs_pad, w, b, ext, out_dtype=logits_dtype)

    # CTC alpha recursion (Pallas) + tiny XLA readout.
    loss = _ctc_loss_from_emit(
        emit, hlens, olens,
        valid.astype(jnp.float32),
        allow_skip.astype(jnp.float32),
        init_mask.astype(jnp.float32))
    loss = loss / B          # loss_fn divides by th_pred.size(1) == B
    loss = jnp.sum(loss)     # reduce=True -> .sum() (scalar, no-op)
    return loss, ys_hat


# ----------------------------------------------------------------------------
# Pure numpy reference (float64) used only for the in-script correctness check.
# ----------------------------------------------------------------------------
def _reference_ctc_loss(logits_tbo, hlens, ys_pad, blank=0):
    lp = np.asarray(logits_tbo, dtype=np.float64)
    T, B, _ = lp.shape
    mx = lp.max(axis=-1, keepdims=True)
    logp = lp - (mx + np.log(np.exp(lp - mx).sum(axis=-1, keepdims=True)))
    hlens = np.asarray(hlens)
    ys = np.asarray(ys_pad)
    total = 0.0
    for bi in range(B):
        labels = [int(v) for v in ys[bi] if v != -1]
        ext = [blank]
        for v in labels:
            ext.extend([v, blank])
        S, Tb = len(ext), int(hlens[bi])
        alpha = np.full(S, -np.inf)
        alpha[0] = logp[0, bi, ext[0]]
        if S > 1:
            alpha[1] = logp[0, bi, ext[1]]
        for t in range(1, Tb):
            prev, alpha = alpha, np.full(S, -np.inf)
            for s in range(S):
                cands = [prev[s]]
                if s >= 1:
                    cands.append(prev[s - 1])
                if s >= 2 and ext[s] != blank and ext[s] != ext[s - 2]:
                    cands.append(prev[s - 2])
                m = max(cands)
                if np.isfinite(m):
                    alpha[s] = m + np.log(sum(np.exp(c - m) for c in cands)) \
                               + logp[t, bi, ext[s]]
        tails = [alpha[S - 1]] + ([alpha[S - 2]] if S > 1 else [])
        m = max(tails)
        ll = m + np.log(sum(np.exp(c - m) for c in tails)) if np.isfinite(m) else -np.inf
        li = -ll
        total += li if np.isfinite(li) else 0.0     # zero_infinity=True
    return total / B


if __name__ == "__main__":
    B, T, eprojs, odim = 2, 8, 32, 16

    key = jax.random.PRNGKey(0)
    k_h, k_w, k_b = jax.random.split(key, 3)

    hs_pad = jax.random.normal(k_h, (B, T, eprojs), dtype=jnp.float32)
    hlens = jnp.array([8, 6], dtype=jnp.int32)
    ys_pad = jnp.array([[3, 5, 2, -1],
                        [1, 4, -1, -1]], dtype=jnp.int32)

    # Deterministic Linear(eprojs, odim) init, PyTorch-style uniform bounds.
    bound = 1.0 / (eprojs ** 0.5)
    w = jax.random.uniform(k_w, (eprojs, odim), minval=-bound, maxval=bound,
                           dtype=jnp.float32)
    b = jax.random.uniform(k_b, (1, odim), minval=-bound, maxval=bound,
                           dtype=jnp.float32)

    loss, ys_hat = jax.jit(ctc_forward)(hs_pad, hlens, ys_pad, w, b)
    jax.block_until_ready((loss, ys_hat))

    assert ys_hat.shape == (T, B, odim)
    assert loss.shape == ()
    assert bool(jnp.isfinite(loss))

    # Reference check (same bf16-rounded inputs, f32/f64 math).
    x32 = hs_pad.astype(jnp.bfloat16).astype(jnp.float32)
    w32 = w.astype(jnp.bfloat16).astype(jnp.float32)
    ref_logits = jnp.einsum("btd,do->tbo", x32, w32) + b.reshape(1, 1, odim)
    np.testing.assert_allclose(np.asarray(ys_hat, dtype=np.float32),
                               np.asarray(ref_logits), rtol=2e-2, atol=2e-2)
    ref_loss = _reference_ctc_loss(np.asarray(ref_logits), np.asarray(hlens),
                                   np.asarray(ys_pad))
    np.testing.assert_allclose(float(loss), ref_loss, rtol=1e-3, atol=1e-3)

    print("KERNEL_OK")
</pallas_src>

<mosaic_0001>
module attributes {stable_mosaic.version = 11 : i64} {
  func.func @_proj_emit_kernel(%arg0: i32, %arg1: i32, %arg2: i32, %arg3: memref<8x32xbf16, #tpu.memory_space<vmem>>, %arg4: memref<32x128xbf16, #tpu.memory_space<vmem>>, %arg5: memref<1x128xf32, #tpu.memory_space<vmem>>, %arg6: memref<1x32x128xbf16, #tpu.memory_space<vmem>>, %arg7: memref<1x1x128xf32, #tpu.memory_space<vmem>>, %arg8: memref<8x128xbf16, #tpu.memory_space<vmem>>, %arg9: memref<8x128xf32, #tpu.memory_space<vmem>>, %arg10: memref<8x1xf32, #tpu.memory_space<vmem>>, %arg11: memref<8x1xf32, #tpu.memory_space<vmem>>) attributes {dimension_semantics = [#tpu.dimension_semantics<parallel>, #tpu.dimension_semantics<parallel>, #tpu.dimension_semantics<arbitrary>], iteration_bounds = array<i64: 2, 1, 1>, scalar_prefetch = 0 : i64, scratch_operands = 2 : i64, tpu.core_type = #tpu.core_type<tc>, window_params = [{transform_indices = @transform_0, window_bounds = array<i64: 8, 32>}, {transform_indices = @transform_1, window_bounds = array<i64: 32, 128>}, {transform_indices = @transform_2, window_bounds = array<i64: 1, 128>}, {transform_indices = @transform_3, window_bounds = array<i64: 1, 32, 128>}, {transform_indices = @transform_4, window_bounds = array<i64: 1, 1, 128>}, {transform_indices = @transform_5, window_bounds = array<i64: 8, 128>}, {transform_indices = @transform_6, window_bounds = array<i64: 8, 128>}]} {
    %c0 = arith.constant 0 : index
    %c0_0 = arith.constant 0 : index
    %0 = vector.load %arg3[%c0, %c0_0] : memref<8x32xbf16, #tpu.memory_space<vmem>>, vector<8x32xbf16>
    %c0_1 = arith.constant 0 : index
    %c0_2 = arith.constant 0 : index
    %1 = vector.load %arg4[%c0_1, %c0_2] : memref<32x128xbf16, #tpu.memory_space<vmem>>, vector<32x128xbf16>
    %cst = arith.constant dense<0.000000e+00> : vector<8x128xf32>
    %2 = tpu.matmul %0, %1, %cst {dimension_numbers = #tpu.dot_dimension_numbers<[1], [0], [0], [1], [0, 0, 1, 1], [], []>} : vector<8x32xbf16>, vector<32x128xbf16>, vector<8x128xf32> -> vector<8x128xf32>
    %c0_3 = arith.constant 0 : index
    %c0_4 = arith.constant 0 : index
    %3 = vector.load %arg5[%c0_3, %c0_4] : memref<1x128xf32, #tpu.memory_space<vmem>>, vector<1x128xf32>
    %4 = vector.broadcast %3 : vector<1x128xf32> to vector<8x128xf32>
    %5 = arith.addf %2, %4 : vector<8x128xf32>
    %6 = arith.truncf %5 : vector<8x128xf32> to vector<8x128xbf16>
    %c0_5 = arith.constant 0 : index
    %c0_6 = arith.constant 0 : index
    %7 = vector.load %arg8[%c0_5, %c0_6] : memref<8x128xbf16, #tpu.memory_space<vmem>>, vector<8x128xbf16>
    tpu.vector_store %arg8[%c0_5, %c0_6], %6 {strides = array<i32>} : memref<8x128xbf16, #tpu.memory_space<vmem>>, vector<8x128xbf16>,
    %cst_7 = arith.constant dense<0xFF800000> : vector<8xf32>
    %8 = vector.multi_reduction <maximumf>, %5, %cst_7 [1] : vector<8x128xf32> to vector<8xf32>
    %9 = vector.shape_cast %8 : vector<8xf32> to vector<8x1xf32>
    %c0_i32 = arith.constant 0 : i32
    %10 = arith.cmpi eq, %arg2, %c0_i32 : i32
    %11 = arith.extui %10 : i1 to i32
    %c0_i32_8 = arith.constant 0 : i32
    %12 = arith.cmpi ne, %11, %c0_i32_8 : i32
    scf.if %12 {
      %cst_20 = arith.constant 0xFF800000 : f32
      %30 = vector.broadcast %cst_20 : f32 to vector<8x1xf32>
      %c0_21 = arith.constant 0 : index
      %c0_22 = arith.constant 0 : index
      %31 = vector.load %arg10[%c0_21, %c0_22] : memref<8x1xf32, #tpu.memory_space<vmem>>, vector<8x1xf32>
      tpu.vector_store %arg10[%c0_21, %c0_22], %30 {strides = array<i32>} : memref<8x1xf32, #tpu.memory_space<vmem>>, vector<8x1xf32>,
      %cst_23 = arith.constant 0.000000e+00 : f32
      %32 = vector.broadcast %cst_23 : f32 to vector<8x1xf32>
      %c0_24 = arith.constant 0 : index
      %c0_25 = arith.constant 0 : index
      %33 = vector.load %arg11[%c0_24, %c0_25] : memref<8x1xf32, #tpu.memory_space<vmem>>, vector<8x1xf32>
      tpu.vector_store %arg11[%c0_24, %c0_25], %32 {strides = array<i32>} : memref<8x1xf32, #tpu.memory_space<vmem>>, vector<8x1xf32>,
    } else {
    }
    %c0_9 = arith.constant 0 : index
    %c0_10 = arith.constant 0 : index
    %13 = vector.load %arg10[%c0_9, %c0_10] : memref<8x1xf32, #tpu.memory_space<vmem>>, vector<8x1xf32>
    %14 = arith.maximumf %13, %9 : vector<8x1xf32>
    %c0_11 = arith.constant 0 : index
    %c0_12 = arith.constant 0 : index
    %15 = vector.load %arg11[%c0_11, %c0_12] : memref<8x1xf32, #tpu.memory_space<vmem>>, vector<8x1xf32>
    %16 = arith.subf %13, %14 : vector<8x1xf32>
    %17 = math.exp %16 : vector<8x1xf32>
    %18 = arith.mulf %15, %17 : vector<8x1xf32>
    %19 = vector.broadcast %14 : vector<8x1xf32> to vector<8x128xf32>
    %20 = arith.subf %5, %19 : vector<8x128xf32>
    %21 = math.exp %20 : vector<8x128xf32>
    %cst_13 = arith.constant dense<0.000000e+00> : vector<8xf32>
    %22 = vector.multi_reduction <add>, %21, %cst_13 [1] : vector<8x128xf32> to vector<8xf32>
    %23 = vector.shape_cast %22 : vector<8xf32> to vector<8x1xf32>
    %24 = arith.addf %18, %23 : vector<8x1xf32>
    %c0_14 = arith.constant 0 : index
    %c0_15 = arith.constant 0 : index
    %25 = vector.load %arg11[%c0_14, %c0_15] : memref<8x1xf32, #tpu.memory_space<vmem>>, vector<8x1xf32>
    tpu.vector_store %arg11[%c0_14, %c0_15], %24 {strides = array<i32>} : memref<8x1xf32, #tpu.memory_space<vmem>>, vector<8x1xf32>,
    %c0_16 = arith.constant 0 : index
    %c0_17 = arith.constant 0 : index
    %26 = vector.load %arg10[%c0_16, %c0_17] : memref<8x1xf32, #tpu.memory_space<vmem>>, vector<8x1xf32>
    tpu.vector_store %arg10[%c0_16, %c0_17], %14 {strides = array<i32>} : memref<8x1xf32, #tpu.memory_space<vmem>>, vector<8x1xf32>,
    %c0_i32_18 = arith.constant 0 : i32
    %27 = arith.cmpi eq, %arg2, %c0_i32_18 : i32
    %28 = arith.extui %27 : i1 to i32
    %c0_i32_19 = arith.constant 0 : i32
    %29 = arith.cmpi ne, %28, %c0_i32_19 : i32
    scf.if %29 {
      %c0_20 = arith.constant 0 : index
      %c0_21 = arith.constant 0 : index
      %30 = vector.load %arg10[%c0_20, %c0_21] : memref<8x1xf32, #tpu.memory_space<vmem>>, vector<8x1xf32>
      %c0_22 = arith.constant 0 : index
      %c0_23 = arith.constant 0 : index
      %31 = vector.load %arg11[%c0_22, %c0_23] : memref<8x1xf32, #tpu.memory_space<vmem>>, vector<8x1xf32>
      %32 = math.log %31 : vector<8x1xf32>
      %33 = arith.addf %30, %32 : vector<8x1xf32>
      %c0_24 = arith.constant 0 : index
      %c0_25 = arith.constant 0 : index
      %c0_26 = arith.constant 0 : index
      %34 = vector.load %arg6[%c0_24, %c0_25, %c0_26] : memref<1x32x128xbf16, #tpu.memory_space<vmem>>, vector<1x32x128xbf16>
      %35 = vector.shape_cast %34 : vector<1x32x128xbf16> to vector<32x128xbf16>
      %cst_27 = arith.constant dense<0.000000e+00> : vector<8x128xf32>
      %36 = tpu.matmul %0, %35, %cst_27 {dimension_numbers = #tpu.dot_dimension_numbers<[1], [0], [0], [1], [0, 0, 1, 1], [], []>} : vector<8x32xbf16>, vector<32x128xbf16>, vector<8x128xf32> -> vector<8x128xf32>
      %c0_28 = arith.constant 0 : index
      %c0_29 = arith.constant 0 : index
      %c0_30 = arith.constant 0 : index
      %37 = vector.load %arg7[%c0_28, %c0_29, %c0_30] : memref<1x1x128xf32, #tpu.memory_space<vmem>>, vector<1x1x128xf32>
      %38 = vector.shape_cast %37 : vector<1x1x128xf32> to vector<1x128xf32>
      %39 = vector.broadcast %38 : vector<1x128xf32> to vector<8x128xf32>
      %40 = arith.addf %36, %39 : vector<8x128xf32>
      %41 = vector.broadcast %33 : vector<8x1xf32> to vector<8x128xf32>
      %42 = arith.subf %40, %41 : vector<8x128xf32>
      %c0_31 = arith.constant 0 : index
      %c0_32 = arith.constant 0 : index
      %43 = vector.load %arg9[%c0_31, %c0_32] : memref<8x128xf32, #tpu.memory_space<vmem>>, vector<8x128xf32>
      tpu.vector_store %arg9[%c0_31, %c0_32], %42 {strides = array<i32>} : memref<8x128xf32, #tpu.memory_space<vmem>>, vector<8x128xf32>,
    } else {
    }
    return
  }
  func.func @transform_0(%arg0: i32, %arg1: i32, %arg2: i32) -> (i32, i32) {
    %c1_i32 = arith.constant 1 : i32
    %0 = arith.muli %arg0, %c1_i32 : i32
    %1 = arith.addi %0, %arg1 : i32
    %c0_i32 = arith.constant 0 : i32
    %c0_i32_0 = arith.constant 0 : i32
    return %1, %c0_i32 : i32, i32
  }
  func.func @transform_1(%arg0: i32, %arg1: i32, %arg2: i32) -> (i32, i32) {
    %c0_i32 = arith.constant 0 : i32
    %c0_i32_0 = arith.constant 0 : i32
    return %c0_i32, %arg2 : i32, i32
  }
  func.func @transform_2(%arg0: i32, %arg1: i32, %arg2: i32) -> (i32, i32) {
    %c0_i32 = arith.constant 0 : i32
    %c0_i32_0 = arith.constant 0 : i32
    return %c0_i32, %arg2 : i32, i32
  }
  func.func @transform_3(%arg0: i32, %arg1: i32, %arg2: i32) -> (i32, i32, i32) {
    %c0_i32 = arith.constant 0 : i32
    %c0_i32_0 = arith.constant 0 : i32
    %c0_i32_1 = arith.constant 0 : i32
    return %arg0, %c0_i32, %c0_i32_0 : i32, i32, i32
  }
  func.func @transform_4(%arg0: i32, %arg1: i32, %arg2: i32) -> (i32, i32, i32) {
    %c0_i32 = arith.constant 0 : i32
    %c0_i32_0 = arith.constant 0 : i32
    %c0_i32_1 = arith.constant 0 : i32
    return %arg0, %c0_i32, %c0_i32_0 : i32, i32, i32
  }
  func.func @transform_5(%arg0: i32, %arg1: i32, %arg2: i32) -> (i32, i32) {
    %c1_i32 = arith.constant 1 : i32
    %0 = arith.muli %arg0, %c1_i32 : i32
    %1 = arith.addi %0, %arg2 : i32
    %c0_i32 = arith.constant 0 : i32
    return %arg1, %1 : i32, i32
  }
  func.func @transform_6(%arg0: i32, %arg1: i32, %arg2: i32) -> (i32, i32) {
    %c0_i32 = arith.constant 0 : i32
    return %arg1, %arg0 : i32, i32
  }
}

module attributes {stable_mosaic.version = 11 : i64} {
  func.func @_ctc_alpha_kernel(%arg0: i32, %arg1: i32, %arg2: memref<2x1xi32, #tpu.memory_space<vmem>>, %arg3: memref<2x128xf32, #tpu.memory_space<vmem>>, %arg4: memref<2x128xf32, #tpu.memory_space<vmem>>, %arg5: memref<2x128xf32, #tpu.memory_space<vmem>>, %arg6: memref<8x2x128xf32, #tpu.memory_space<vmem>>, %arg7: memref<2x128xf32, #tpu.memory_space<vmem>>) attributes {dimension_semantics = [#tpu.dimension_semantics<parallel>, #tpu.dimension_semantics<arbitrary>], iteration_bounds = array<i64: 1, 1>, scalar_prefetch = 0 : i64, scratch_operands = 0 : i64, tpu.core_type = #tpu.core_type<tc>, window_params = [{transform_indices = @transform_0, window_bounds = array<i64: 2, 1>}, {transform_indices = @transform_1, window_bounds = array<i64: 2, 128>}, {transform_indices = @transform_2, window_bounds = array<i64: 2, 128>}, {transform_indices = @transform_3, window_bounds = array<i64: 2, 128>}, {transform_indices = @transform_4, window_bounds = array<i64: 8, 2, 128>}, {transform_indices = @transform_5, window_bounds = array<i64: 2, 128>}]} {
    %c0 = arith.constant 0 : index
    %c0_0 = arith.constant 0 : index
    %0 = vector.load %arg3[%c0, %c0_0] : memref<2x128xf32, #tpu.memory_space<vmem>>, vector<2x128xf32>
    %cst = arith.constant 5.000000e-01 : f32
    %1 = vector.broadcast %cst : f32 to vector<2x128xf32>
    %2 = arith.cmpf ogt, %0, %1 : vector<2x128xf32>
    %c0_1 = arith.constant 0 : index
    %c0_2 = arith.constant 0 : index
    %3 = vector.load %arg4[%c0_1, %c0_2] : memref<2x128xf32, #tpu.memory_space<vmem>>, vector<2x128xf32>
    %cst_3 = arith.constant 5.000000e-01 : f32
    %4 = vector.broadcast %cst_3 : f32 to vector<2x128xf32>
    %5 = arith.cmpf ogt, %3, %4 : vector<2x128xf32>
    %c0_4 = arith.constant 0 : index
    %c0_5 = arith.constant 0 : index
    %6 = vector.load %arg2[%c0_4, %c0_5] : memref<2x1xi32, #tpu.memory_space<vmem>>, vector<2x1xi32>
    %7 = tpu.iota {dimensions = array<i32: 1>} : vector<2x128xi32>
    %c1_i32 = arith.constant 1 : i32
    %8 = vector.broadcast %c1_i32 : i32 to vector<2x128xi32>
    %9 = arith.cmpi sge, %7, %8 : vector<2x128xi32>
    %c0_i32 = arith.constant 0 : i32
    %10 = arith.cmpi eq, %arg1, %c0_i32 : i32
    %11 = arith.extui %10 : i1 to i32
    %cst_6 = arith.constant -1.000000e+30 : f32
    %c0_i32_7 = arith.constant 0 : i32
    %12 = arith.cmpi ne, %11, %c0_i32_7 : i32
    scf.if %12 {
      %c0_11 = arith.constant 0 : index
      %c0_12 = arith.constant 0 : index
      %16 = vector.load %arg5[%c0_11, %c0_12] : memref<2x128xf32, #tpu.memory_space<vmem>>, vector<2x128xf32>
      %cst_13 = arith.constant 5.000000e-01 : f32
      %17 = vector.broadcast %cst_13 : f32 to vector<2x128xf32>
      %18 = arith.cmpf ogt, %16, %17 : vector<2x128xf32>
      %c0_14 = arith.constant 0 : index
      %c0_15 = arith.constant 0 : index
      %c0_16 = arith.constant 0 : index
      %19 = vector.load %arg6[%c0_14, %c0_15, %c0_16] : memref<8x2x128xf32, #tpu.memory_space<vmem>>, vector<1x2x128xf32>
      %20 = vector.shape_cast %19 : vector<1x2x128xf32> to vector<2x128xf32>
      %21 = vector.broadcast %cst_6 : f32 to vector<2x128xf32>
      %22 = arith.select %18, %20, %21 : vector<2x128xi1>, vector<2x128xf32>
      %c1_i32_17 = arith.constant 1 : i32
      %c7_i32 = arith.constant 7 : i32
      %23 = arith.addi %c1_i32_17, %c7_i32 : i32
      %c1_i32_18 = arith.constant 1 : i32
      %24 = scf.for %arg8 = %c1_i32_17 to %23 step %c1_i32_18 iter_args(%arg9 = %22) -> (vector<2x128xf32>)  : i32 {
        %c8_i32 = arith.constant 8 : i32
        %26 = arith.muli %arg1, %c8_i32 : i32
        %27 = arith.addi %26, %arg8 : i32
        %c1_i32_22 = arith.constant 1 : i32
        %28 = tpu.dynamic_rotate %arg9 by %c1_i32_22 dim 1 : vector<2x128xf32>, i32 -> vector<2x128xf32>
        %29 = vector.broadcast %cst_6 : f32 to vector<2x128xf32>
        %30 = arith.select %9, %28, %29 : vector<2x128xi1>, vector<2x128xf32>
        %c2_i32 = arith.constant 2 : i32
        %31 = tpu.dynamic_rotate %arg9 by %c2_i32 dim 1 : vector<2x128xf32>, i32 -> vector<2x128xf32>
        %32 = vector.broadcast %cst_6 : f32 to vector<2x128xf32>
        %33 = arith.select %5, %31, %32 : vector<2x128xi1>, vector<2x128xf32>
        %34 = arith.maximumf %30, %33 : vector<2x128xf32>
        %35 = arith.maximumf %arg9, %34 : vector<2x128xf32>
        %36 = arith.subf %arg9, %35 : vector<2x128xf32>
        %37 = math.exp %36 : vector<2x128xf32>
        %38 = arith.subf %30, %35 : vector<2x128xf32>
        %39 = math.exp %38 : vector<2x128xf32>
        %40 = arith.addf %37, %39 : vector<2x128xf32>
        %41 = arith.subf %33, %35 : vector<2x128xf32>
        %42 = math.exp %41 : vector<2x128xf32>
        %43 = arith.addf %40, %42 : vector<2x128xf32>
        %44 = math.log %43 : vector<2x128xf32>
        %45 = arith.addf %35, %44 : vector<2x128xf32>
        %46 = arith.index_cast %arg8 : i32 to index
        %c0_23 = arith.constant 0 : index
        %c0_24 = arith.constant 0 : index
        %47 = vector.load %arg6[%46, %c0_23, %c0_24] : memref<8x2x128xf32, #tpu.memory_space<vmem>>, vector<1x2x128xf32>
        %48 = vector.shape_cast %47 : vector<1x2x128xf32> to vector<2x128xf32>
        %49 = arith.addf %45, %48 : vector<2x128xf32>
        %50 = vector.broadcast %cst_6 : f32 to vector<2x128xf32>
        %51 = arith.select %2, %49, %50 : vector<2x128xi1>, vector<2x128xf32>
        %52 = vector.broadcast %27 : i32 to vector<2x1xi32>
        %53 = arith.cmpi slt, %52, %6 : vector<2x1xi32>
        %54 = vector.shape_cast %53 : vector<2x1xi1> to vector<2x1xi1>
        %55 = vector.broadcast %54 : vector<2x1xi1> to vector<2x128xi1>
        %56 = arith.select %55, %51, %arg9 : vector<2x128xi1>, vector<2x128xf32>
        scf.yield %56 : vector<2x128xf32>
      }
      %c7_i32_19 = arith.constant 7 : i32
      %c0_20 = arith.constant 0 : index
      %c0_21 = arith.constant 0 : index
      %25 = vector.load %arg7[%c0_20, %c0_21] : memref<2x128xf32, #tpu.memory_space<vmem>>, vector<2x128xf32>
      tpu.vector_store %arg7[%c0_20, %c0_21], %24 {strides = array<i32>} : memref<2x128xf32, #tpu.memory_space<vmem>>, vector<2x128xf32>,
    } else {
    }
    %c0_i32_8 = arith.constant 0 : i32
    %13 = arith.cmpi sgt, %arg1, %c0_i32_8 : i32
    %14 = arith.extui %13 : i1 to i32
    %cst_9 = arith.constant -1.000000e+30 : f32
    %c0_i32_10 = arith.constant 0 : i32
    %15 = arith.cmpi ne, %14, %c0_i32_10 : i32
    scf.if %15 {
      %c0_11 = arith.constant 0 : index
      %c0_12 = arith.constant 0 : index
      %16 = vector.load %arg7[%c0_11, %c0_12] : memref<2x128xf32, #tpu.memory_space<vmem>>, vector<2x128xf32>
      %c0_i32_13 = arith.constant 0 : i32
      %c8_i32 = arith.constant 8 : i32
      %17 = arith.addi %c0_i32_13, %c8_i32 : i32
      %c1_i32_14 = arith.constant 1 : i32
      %18 = scf.for %arg8 = %c0_i32_13 to %17 step %c1_i32_14 iter_args(%arg9 = %16) -> (vector<2x128xf32>)  : i32 {
        %c8_i32_18 = arith.constant 8 : i32
        %20 = arith.muli %arg1, %c8_i32_18 : i32
        %21 = arith.addi %20, %arg8 : i32
        %c1_i32_19 = arith.constant 1 : i32
        %22 = tpu.dynamic_rotate %arg9 by %c1_i32_19 dim 1 : vector<2x128xf32>, i32 -> vector<2x128xf32>
        %23 = vector.broadcast %cst_9 : f32 to vector<2x128xf32>
        %24 = arith.select %9, %22, %23 : vector<2x128xi1>, vector<2x128xf32>
        %c2_i32 = arith.constant 2 : i32
        %25 = tpu.dynamic_rotate %arg9 by %c2_i32 dim 1 : vector<2x128xf32>, i32 -> vector<2x128xf32>
        %26 = vector.broadcast %cst_9 : f32 to vector<2x128xf32>
        %27 = arith.select %5, %25, %26 : vector<2x128xi1>, vector<2x128xf32>
        %28 = arith.maximumf %24, %27 : vector<2x128xf32>
        %29 = arith.maximumf %arg9, %28 : vector<2x128xf32>
        %30 = arith.subf %arg9, %29 : vector<2x128xf32>
        %31 = math.exp %30 : vector<2x128xf32>
        %32 = arith.subf %24, %29 : vector<2x128xf32>
        %33 = math.exp %32 : vector<2x128xf32>
        %34 = arith.addf %31, %33 : vector<2x128xf32>
        %35 = arith.subf %27, %29 : vector<2x128xf32>
        %36 = math.exp %35 : vector<2x128xf32>
        %37 = arith.addf %34, %36 : vector<2x128xf32>
        %38 = math.log %37 : vector<2x128xf32>
        %39 = arith.addf %29, %38 : vector<2x128xf32>
        %40 = arith.index_cast %arg8 : i32 to index
        %c0_20 = arith.constant 0 : index
        %c0_21 = arith.constant 0 : index
        %41 = vector.load %arg6[%40, %c0_20, %c0_21] : memref<8x2x128xf32, #tpu.memory_space<vmem>>, vector<1x2x128xf32>
        %42 = vector.shape_cast %41 : vector<1x2x128xf32> to vector<2x128xf32>
        %43 = arith.addf %39, %42 : vector<2x128xf32>
        %44 = vector.broadcast %cst_9 : f32 to vector<2x128xf32>
        %45 = arith.select %2, %43, %44 : vector<2x128xi1>, vector<2x128xf32>
        %46 = vector.broadcast %21 : i32 to vector<2x1xi32>
        %47 = arith.cmpi slt, %46, %6 : vector<2x1xi32>
        %48 = vector.shape_cast %47 : vector<2x1xi1> to vector<2x1xi1>
        %49 = vector.broadcast %48 : vector<2x1xi1> to vector<2x128xi1>
        %50 = arith.select %49, %45, %arg9 : vector<2x128xi1>, vector<2x128xf32>
        scf.yield %50 : vector<2x128xf32>
      }
      %c8_i32_15 = arith.constant 8 : i32
      %c0_16 = arith.constant 0 : index
      %c0_17 = arith.constant 0 : index
      %19 = vector.load %arg7[%c0_16, %c0_17] : memref<2x128xf32, #tpu.memory_space<vmem>>, vector<2x128xf32>
      tpu.vector_store %arg7[%c0_16, %c0_17], %18 {strides = array<i32>} : memref<2x128xf32, #tpu.memory_space<vmem>>, vector<2x128xf32>,
    } else {
    }
    return
  }
  func.func @transform_0(%arg0: i32, %arg1: i32) -> (i32, i32) {
    %c0_i32 = arith.constant 0 : i32
    %c0_i32_0 = arith.constant 0 : i32
    return %arg0, %c0_i32 : i32, i32
  }
  func.func @transform_1(%arg0: i32, %arg1: i32) -> (i32, i32) {
    %c0_i32 = arith.constant 0 : i32
    %c0_i32_0 = arith.constant 0 : i32
    return %arg0, %c0_i32 : i32, i32
  }
  func.func @transform_2(%arg0: i32, %arg1: i32) -> (i32, i32) {
    %c0_i32 = arith.constant 0 : i32
    %c0_i32_0 = arith.constant 0 : i32
    return %arg0, %c0_i32 : i32, i32
  }
  func.func @transform_3(%arg0: i32, %arg1: i32) -> (i32, i32) {
    %c0_i32 = arith.constant 0 : i32
    %c0_i32_0 = arith.constant 0 : i32
    return %arg0, %c0_i32 : i32, i32
  }
  func.func @transform_4(%arg0: i32, %arg1: i32) -> (i32, i32, i32) {
    %c0_i32 = arith.constant 0 : i32
    %c0_i32_0 = arith.constant 0 : i32
    return %arg1, %arg0, %c0_i32 : i32, i32, i32
  }
  func.func @transform_5(%arg0: i32, %arg1: i32) -> (i32, i32) {
    %c0_i32 = arith.constant 0 : i32
    %c0_i32_0 = arith.constant 0 : i32
    return %arg0, %c0_i32 : i32, i32
  }
}

</mosaic_0001>

<llo_original>
// kernel: ctc_forward.2
$region0: #{ctc_forward.2}
  #allocation0 [shape = 'u32[]', space=smem, size = 0x4, offset = 0x4, fixed_abs, tag = 'smem constant byte address 0x4 - core index']
  #allocation1 [shape = 'u32[144,128]{1,0:T(1,128)}', space=vmem, size = 0x12000, scoped, tag = 'internal scratch']
  #allocation2 [shape = 'f32[8,1]{1,0:T(8,128)}', space=vmem, size = 0x1000, scoped, tag = 'scratch operand']
  #allocation3 [shape = 'f32[8,1]{1,0:T(8,128)}', space=vmem, size = 0x1000, scoped, tag = 'scratch operand']
  %s0 = inlined_call_operand.vmem [shape: bf16[16,32], index: 0, kind: input, shape index: {}]
  %s1 = inlined_call_operand.vmem [shape: bf16[32,128], index: 1, kind: input, shape index: {}]
  %s2 = inlined_call_operand.vmem [shape: f32[1,128], index: 2, kind: input, shape index: {}]
  %s3 = inlined_call_operand.vmem [shape: bf16[2,32,128], index: 3, kind: input, shape index: {}]
  %s4 = inlined_call_operand.vmem [shape: f32[2,1,128], index: 4, kind: input, shape index: {}]
  %s5 = inlined_call_operand.vmem [shape: bf16[8,256], index: 5, kind: output, shape index: {0}]
  %s6 = inlined_call_operand.vmem [shape: f32[8,256], index: 6, kind: output, shape index: {1}]
  %7 = xla_tuple %s5, %s6
  %s8 = sld [smem:[#allocation0]]
  $region69: #{ctc_forward.2} parent=0
    _
  %s10 = ssub.s32 1, %s8
  %s11 = scalar_select 0, %s10, %s8
  loop: start=0, step=1, limit=4
  $region2: #{ctc_forward.2} parent=0 // loop_pre_header
    _
  $region3: #{ctc_forward.2} parent=0 // loop_header
    %s13 = sphi 0, %s17
    %p14 = scmp.ge.s32.totalorder %s13, 4
    %s20 = sphi 0, %s39
    %s21 = sphi 0, %s35
    %s22 = sphi 0, %s31
    %s23 = sphi 0, %s20
    %s24 = sphi 0, %s21
    %s25 = sphi 0, %s22
    %s26 = sphi 0, %s23
    %s27 = sphi 0, %s24
    %s28 = sphi 0, %s25
    %s44 = sphi 0, %s46
    %s47 = sphi 0, %s44
    %s48 = sphi 0, %s47
    %s64 = sphi 0, %s48
    %s70 = sphi 0, %s72
    %s73 = sphi 0, %s70
    %s74 = sphi 0, %s73
    %s90 = sphi 0, %s74
    %s96 = sphi 0, %s98
    %s99 = sphi 0, %s96
    %s100 = sphi 0, %s99
    %s116 = sphi 0, %s100
    %s122 = sphi 0, %s124
    %s125 = sphi 0, %s122
    %s126 = sphi 0, %s125
    %s142 = sphi 0, %s126
    %s148 = sphi 0, %s150
    %s151 = sphi 0, %s148
    %s152 = sphi 0, %s151
    %s168 = sphi 0, %s152
    %s178 = sphi 0, %s180
    %s181 = sphi 0, %s178
    %s182 = sphi 0, %s181
    %s198 = sphi 0, %s182
    %s206 = sphi 0, %s208
    %s209 = sphi 0, %s206
    %s210 = sphi 0, %s209
    %s226 = sphi 0, %s210
  $region4: #{ctc_forward.2} parent=0 // loop_header_branch
    %16 = sbr.rel (%p14) target = $region8
  $region5: #{ctc_forward.2} parent=0 // loop_body
    %s18 = ssub.s32 %s13, 1
    %s19 = ssub.s32 %s13, 2
    %s29 = sadd.s32 1, %s22
    %p30 = scmp.ge.s32.totalorder %s29, 1
    %s31 = scalar_select %p30, 0, %s29
    %s32 = sadd.s32 1, %s21
    %s33 = scalar_select %p30, %s32, %s21
    %p34 = scmp.ge.s32.totalorder %s33, 1
    %s35 = scalar_select %p34, 0, %s33
    %s36 = sadd.s32 1, %s20
    %s37 = scalar_select %p34, %s36, %s20
    %p38 = scmp.ge.s32.totalorder %s37, 2
    %s39 = scalar_select %p38, 0, %s37
    %s40 = sadd.s32 %s20, %s21
    %s41 = sadd.s32 %s39, %s35
    %s42 = ssub.s32 %s40, %s41
    %p43 = scmp.eq.s32.totalorder %s42, 0
    %s45 = sadd.s32 %s44, 1
    %s46 = scalar_select %p43, %s44, %s45
    %p49 = pneg %p43
    %p50 = scmp.eq.s32.totalorder %s13, 1
    %p51 = por %p49, %p50
    %p52 = scmp.ne.s32.totalorder %s44, %s47
    %p53 = scmp.eq.s32.totalorder %s13, 0
    %p54 = por %p52, %p53
    %p55 = scmp.ne.s32.totalorder %s44, %s47
    %p56 = scmp.eq.s32.totalorder %s18, 1
    %p57 = por %p55, %p56
    %p58 = scmp.ne.s32.totalorder %s47, %s48
    %p59 = scmp.eq.s32.totalorder %s18, 0
    %p60 = por %p58, %p59
    %p61 = scmp.ne.s32.totalorder %s47, %s48
    %p62 = scmp.eq.s32.totalorder %s19, 1
    %p63 = por %p61, %p62
    %p65 = scmp.ne.s32.totalorder %s48, %s64
    %p66 = scmp.eq.s32.totalorder %s19, 0
    %p67 = por %p65, %p66
    %s68 = ssub.s32 %s22, %s31
    %p69 = scmp.eq.s32.totalorder %s68, 0
    %s71 = sadd.s32 %s70, 1
    %s72 = scalar_select %p69, %s70, %s71
    %p75 = pneg %p69
    %p76 = scmp.eq.s32.totalorder %s13, 1
    %p77 = por %p75, %p76
    %p78 = scmp.ne.s32.totalorder %s70, %s73
    %p79 = scmp.eq.s32.totalorder %s13, 0
    %p80 = por %p78, %p79
    %p81 = scmp.ne.s32.totalorder %s70, %s73
    %p82 = scmp.eq.s32.totalorder %s18, 1
    %p83 = por %p81, %p82
    %p84 = scmp.ne.s32.totalorder %s73, %s74
    %p85 = scmp.eq.s32.totalorder %s18, 0
    %p86 = por %p84, %p85
    %p87 = scmp.ne.s32.totalorder %s73, %s74
    %p88 = scmp.eq.s32.totalorder %s19, 1
    %p89 = por %p87, %p88
    %p91 = scmp.ne.s32.totalorder %s74, %s90
    %p92 = scmp.eq.s32.totalorder %s19, 0
    %p93 = por %p91, %p92
    %s94 = ssub.s32 %s22, %s31
    %p95 = scmp.eq.s32.totalorder %s94, 0
    %s97 = sadd.s32 %s96, 1
    %s98 = scalar_select %p95, %s96, %s97
    %p101 = pneg %p95
    %p102 = scmp.eq.s32.totalorder %s13, 1
    %p103 = por %p101, %p102
    %p104 = scmp.ne.s32.totalorder %s96, %s99
    %p105 = scmp.eq.s32.totalorder %s13, 0
    %p106 = por %p104, %p105
    %p107 = scmp.ne.s32.totalorder %s96, %s99
    %p108 = scmp.eq.s32.totalorder %s18, 1
    %p109 = por %p107, %p108
    %p110 = scmp.ne.s32.totalorder %s99, %s100
    %p111 = scmp.eq.s32.totalorder %s18, 0
    %p112 = por %p110, %p111
    %p113 = scmp.ne.s32.totalorder %s99, %s100
    %p114 = scmp.eq.s32.totalorder %s19, 1
    %p115 = por %p113, %p114
    %p117 = scmp.ne.s32.totalorder %s100, %s116
    %p118 = scmp.eq.s32.totalorder %s19, 0
    %p119 = por %p117, %p118
    %s120 = ssub.s32 %s20, %s39
    %p121 = scmp.eq.s32.totalorder %s120, 0
    %s123 = sadd.s32 %s122, 1
    %s124 = scalar_select %p121, %s122, %s123
    %p127 = pneg %p121
    %p128 = scmp.eq.s32.totalorder %s13, 1
    %p129 = por %p127, %p128
    %p130 = scmp.ne.s32.totalorder %s122, %s125
    %p131 = scmp.eq.s32.totalorder %s13, 0
    %p132 = por %p130, %p131
    %p133 = scmp.ne.s32.totalorder %s122, %s125
    %p134 = scmp.eq.s32.totalorder %s18, 1
    %p135 = por %p133, %p134
    %p136 = scmp.ne.s32.totalorder %s125, %s126
    %p137 = scmp.eq.s32.totalorder %s18, 0
    %p138 = por %p136, %p137
    %p139 = scmp.ne.s32.totalorder %s125, %s126
    %p140 = scmp.eq.s32.totalorder %s19, 1
    %p141 = por %p139, %p140
    %p143 = scmp.ne.s32.totalorder %s126, %s142
    %p144 = scmp.eq.s32.totalorder %s19, 0
    %p145 = por %p143, %p144
    %s146 = ssub.s32 %s20, %s39
    %p147 = scmp.eq.s32.totalorder %s146, 0
    %s149 = sadd.s32 %s148, 1
    %s150 = scalar_select %p147, %s148, %s149
    %p153 = pneg %p147
    %p154 = scmp.eq.s32.totalorder %s13, 1
    %p155 = por %p153, %p154
    %p156 = scmp.ne.s32.totalorder %s148, %s151
    %p157 = scmp.eq.s32.totalorder %s13, 0
    %p158 = por %p156, %p157
    %p159 = scmp.ne.s32.totalorder %s148, %s151
    %p160 = scmp.eq.s32.totalorder %s18, 1
    %p161 = por %p159, %p160
    %p162 = scmp.ne.s32.totalorder %s151, %s152
    %p163 = scmp.eq.s32.totalorder %s18, 0
    %p164 = por %p162, %p163
    %p165 = scmp.ne.s32.totalorder %s151, %s152
    %p166 = scmp.eq.s32.totalorder %s19, 1
    %p167 = por %p165, %p166
    %p169 = scmp.ne.s32.totalorder %s152, %s168
    %p170 = scmp.eq.s32.totalorder %s19, 0
    %p171 = por %p169, %p170
    %s172 = sadd.s32 %s20, %s22
    %s173 = sadd.s32 %s39, %s31
    %s174 = ssub.s32 %s21, %s35
    %s175 = ssub.s32 %s172, %s173
    %s176 = sor.u32 %s174, %s175
    %p177 = scmp.eq.s32.totalorder %s176, 0
    %s179 = sadd.s32 %s178, 1
    %s180 = scalar_select %p177, %s178, %s179
    %p183 = pneg %p177
    %p184 = scmp.eq.s32.totalorder %s13, 1
    %p185 = por %p183, %p184
    %p186 = scmp.ne.s32.totalorder %s178, %s181
    %p187 = scmp.eq.s32.totalorder %s13, 0
    %p188 = por %p186, %p187
    %p189 = scmp.ne.s32.totalorder %s178, %s181
    %p190 = scmp.eq.s32.totalorder %s18, 1
    %p191 = por %p189, %p190
    %p192 = scmp.ne.s32.totalorder %s181, %s182
    %p193 = scmp.eq.s32.totalorder %s18, 0
    %p194 = por %p192, %p193
    %p195 = scmp.ne.s32.totalorder %s181, %s182
    %p196 = scmp.eq.s32.totalorder %s19, 1
    %p197 = por %p195, %p196
    %p199 = scmp.ne.s32.totalorder %s182, %s198
    %p200 = scmp.eq.s32.totalorder %s19, 0
    %p201 = por %p199, %p200
    %s202 = ssub.s32 %s21, %s35
    %s203 = ssub.s32 %s20, %s39
    %s204 = sor.u32 %s202, %s203
    %p205 = scmp.eq.s32.totalorder %s204, 0
    %s207 = sadd.s32 %s206, 1
    %s208 = scalar_select %p205, %s206, %s207
    %p211 = pneg %p205
    %p212 = scmp.eq.s32.totalorder %s13, 1
    %p213 = por %p211, %p212
    %p214 = scmp.ne.s32.totalorder %s206, %s209
    %p215 = scmp.eq.s32.totalorder %s13, 0
    %p216 = por %p214, %p215
    %p217 = scmp.ne.s32.totalorder %s206, %s209
    %p218 = scmp.eq.s32.totalorder %s18, 1
    %p219 = por %p217, %p218
    %p220 = scmp.ne.s32.totalorder %s209, %s210
    %p221 = scmp.eq.s32.totalorder %s18, 0
    %p222 = por %p220, %p221
    %p223 = scmp.ne.s32.totalorder %s209, %s210
    %p224 = scmp.eq.s32.totalorder %s19, 1
    %p225 = por %p223, %p224
    %p227 = scmp.ne.s32.totalorder %s210, %s226
    %p228 = scmp.eq.s32.totalorder %s19, 0
    %p229 = por %p227, %p228
    %p230 = scmp.le.s32.totalorder 1, %s13
    %p231 = scmp.lt.s32.totalorder %s13, 3
    %p232 = pnand %p230, %p231
    %p233 = pneg %p232
    // Predicated region
    $region9: #{ctc_forward.2} parent=5 // pred_check
      _
    $region10: #{ctc_forward.2} parent=5 // pred_check_branch
      %235 = sbr.rel (%p232) target = $region12
    $region11: #{ctc_forward.2} parent=5 // pred_region
      %s236 = ssub.s32 %s13, 1
      // Predicated region
      $region13: #{ctc_forward.2} parent=11 // pred_check
        %p237 = pneg %p86
      $region14: #{ctc_forward.2} parent=11 // pred_check_branch
        %239 = sbr.rel (%p237) target = $region16
      $region15: #{ctc_forward.2} parent=11 // pred_region
        %p240 = scmp.lt.s32.totalorder %s25, 0
        %s241 = scalar_select %p240, %s25, 0
        %s242 = smul.addr %s241, 4
        %s243 = scalar_lea.vmem %s1, %s242
      $region16: #{ctc_forward.2} parent=11 // pred_fallthru
        _
      // Predicated region
      $region17: #{ctc_forward.2} parent=11 // pred_check
        %p244 = pneg %p112
      $region18: #{ctc_forward.2} parent=11 // pred_check_branch
        %246 = sbr.rel (%p244) target = $region20
      $region19: #{ctc_forward.2} parent=11 // pred_region
        %p247 = scmp.lt.s32.totalorder %s25, 0
        %s248 = scalar_select %p247, %s25, 0
        %s249 = scalar_lea.vmem %s2, %s248
      $region20: #{ctc_forward.2} parent=11 // pred_fallthru
        _
    $region12: #{ctc_forward.2} parent=5 // pred_fallthru
      _
    %p250 = scmp.lt.s32.totalorder %s13, 2
    // Predicated region
    $region21: #{ctc_forward.2} parent=5 // pred_check
      %p251 = pneg %p250
    $region22: #{ctc_forward.2} parent=5 // pred_check_branch
      %253 = sbr.rel (%p251) target = $region24
    $region23: #{ctc_forward.2} parent=5 // pred_region
      // Predicated region
      $region25: #{ctc_forward.2} parent=23 // pred_check
        %p254 = pneg %p54
      $region26: #{ctc_forward.2} parent=23 // pred_check_branch
        %256 = sbr.rel (%p254) target = $region28
      $region27: #{ctc_forward.2} parent=23 // pred_region
        %s257 = sadd.s32 %s20, %s21
        %p258 = scmp.lt.s32.totalorder %s257, 1
        %s259 = scalar_select %p258, %s257, 1
        %s260 = smul.addr %s259, 4
        %s261 = scalar_lea.vmem %s0, %s260
        %s262 = sadd.s32 %s20, %s21
      $region28: #{ctc_forward.2} parent=23 // pred_fallthru
        _
      // Predicated region
      $region29: #{ctc_forward.2} parent=23 // pred_check
        %p263 = pneg %p132
      $region30: #{ctc_forward.2} parent=23 // pred_check_branch
        %265 = sbr.rel (%p263) target = $region32
      $region31: #{ctc_forward.2} parent=23 // pred_region
        %p266 = scmp.lt.s32.totalorder %s20, 1
        %s267 = scalar_select %p266, %s20, 1
        %s268 = smul.addr %s267, 4
        %s269 = smul.addr %s268, 4
        %s270 = scalar_lea.vmem %s3, %s269
      $region32: #{ctc_forward.2} parent=23 // pred_fallthru
        _
      // Predicated region
      $region33: #{ctc_forward.2} parent=23 // pred_check
        %p271 = pneg %p158
      $region34: #{ctc_forward.2} parent=23 // pred_check_branch
        %273 = sbr.rel (%p271) target = $region36
      $region35: #{ctc_forward.2} parent=23 // pred_region
        %p274 = scmp.lt.s32.totalorder %s20, 1
        %s275 = scalar_select %p274, %s20, 1
        %s276 = scalar_lea.vmem %s4, %s275
      $region36: #{ctc_forward.2} parent=23 // pred_fallthru
        _
    $region24: #{ctc_forward.2} parent=5 // pred_fallthru
      _
    %p277 = scmp.le.s32.totalorder 1, %s13
    %p278 = scmp.lt.s32.totalorder %s13, 3
    %p279 = pnand %p277, %p278
    %p280 = pneg %p279
    // Predicated region
    $region37: #{ctc_forward.2} parent=5 // pred_check
      _
    $region38: #{ctc_forward.2} parent=5 // pred_check_branch
      %282 = sbr.rel (%p279) target = $region40
    $region39: #{ctc_forward.2} parent=5 // pred_region
      %s283 = ssub.s32 %s13, 1
      %s284 = sadd.s32 %s23, %s24
      %p285 = scmp.lt.s32.totalorder %s284, 1
      %s286 = scalar_select %p285, %s284, 1
      %s287 = smul.addr %s286, 4
      %s288 = scalar_lea.vmem %s0, %s287
      %p289 = pneg %p60
      %p290 = pneg %p57
      %p291 = scmp.lt.s32.totalorder %s25, 0
      %s292 = scalar_select %p291, %s25, 0
      %s293 = smul.addr %s292, 4
      %s294 = scalar_lea.vmem %s1, %s293
      %p295 = pneg %p86
      %p296 = pneg %p83
      %p297 = scmp.lt.s32.totalorder %s25, 0
      %s298 = scalar_select %p297, %s25, 0
      %s299 = scalar_lea.vmem %s2, %s298
      %p300 = pneg %p112
      %p301 = pneg %p109
      %p302 = scmp.lt.s32.totalorder %s23, 1
      %s303 = scalar_select %p302, %s23, 1
      %s304 = smul.addr %s303, 4
      %s305 = smul.addr %s304, 4
      %s306 = scalar_lea.vmem %s3, %s305
      %p307 = pneg %p138
      %p308 = pneg %p135
      %p309 = scmp.lt.s32.totalorder %s23, 1
      %s310 = scalar_select %p309, %s23, 1
      %s311 = scalar_lea.vmem %s4, %s310
      %p312 = pneg %p164
      %p313 = pneg %p161
      %p314 = pneg %p194
      %p315 = pneg %p191
      %s316 = sadd.s32 %s23, %s25
      %p317 = scmp.lt.s32.totalorder %s24, 0
      %s318 = scalar_select %p317, %s24, 0
      %p319 = scmp.lt.s32.totalorder %s316, 1
      %s320 = scalar_select %p319, %s316, 1
      %s321 = smul.addr %s318, 2
      %s322 = sadd.s32 %s320, %s321
      %s323 = smul.addr %s322, 4
      %s324 = scalar_lea.vmem %s5, %s323
      %p325 = pneg %p222
      %p326 = pneg %p219
      %p327 = scmp.lt.s32.totalorder %s24, 0
      %s328 = scalar_select %p327, %s24, 0
      %p329 = scmp.lt.s32.totalorder %s23, 1
      %s330 = scalar_select %p329, %s23, 1
      %s331 = smul.addr %s328, 2
      %s332 = sadd.s32 %s330, %s331
      %s333 = smul.addr %s332, 8
      %s334 = scalar_lea.vmem %s6, %s333
      %s335 = sadd.s32 %s23, %s24
      %p336 = scmp.lt.s32.totalorder %s335, 1
      %s337 = scalar_select %p336, %s335, 1
      %s338 = smul.addr %s337, 4
      %s339 = scalar_lea.vmem %s0, %s338
      %s340 = sadd.s32 %s23, %s24
      %p341 = scmp.lt.s32.totalorder %s25, 0
      %s342 = scalar_select %p341, %s25, 0
      %s343 = smul.addr %s342, 4
      %s344 = scalar_lea.vmem %s1, %s343
      %p345 = scmp.lt.s32.totalorder %s25, 0
      %s346 = scalar_select %p345, %s25, 0
      %s347 = scalar_lea.vmem %s2, %s346
      %p348 = scmp.lt.s32.totalorder %s23, 1
      %s349 = scalar_select %p348, %s23, 1
      %s350 = smul.addr %s349, 4
      %s351 = smul.addr %s350, 4
      %s352 = scalar_lea.vmem %s3, %s351
      %p353 = scmp.lt.s32.totalorder %s23, 1
      %s354 = scalar_select %p353, %s23, 1
      %s355 = scalar_lea.vmem %s4, %s354
      %s356 = sadd.s32 %s23, %s25
      %p357 = scmp.lt.s32.totalorder %s24, 0
      %s358 = scalar_select %p357, %s24, 0
      %p359 = scmp.lt.s32.totalorder %s356, 1
      %s360 = scalar_select %p359, %s356, 1
      %s361 = smul.addr %s358, 2
      %s362 = sadd.s32 %s360, %s361
      %s363 = smul.addr %s362, 4
      %s364 = scalar_lea.vmem %s5, %s363
      %s365 = sadd.s32 %s23, %s25
      %p366 = scmp.lt.s32.totalorder %s24, 0
      %s367 = scalar_select %p366, %s24, 0
      %p368 = scmp.lt.s32.totalorder %s23, 1
      %s369 = scalar_select %p368, %s23, 1
      %s370 = smul.addr %s367, 2
      %s371 = sadd.s32 %s369, %s370
      %s372 = smul.addr %s371, 8
      %s373 = scalar_lea.vmem %s6, %s372
      %v375 = vld [vmem:[%s339] sm:$0xf]
      %v376 = vld [vmem:[%s344] sm:$0xf]
      %v377 = vld [vmem:[%s344 + $0x4] sm:$0xf]
      %v378 = vld [vmem:[%s344 + $0x8] sm:$0xf]
      %v379 = vld [vmem:[%s344 + $0xc] sm:$0xf]
      %v380 = vld [vmem:[%s347] sm:$0x1]
      %v382 = vlaneseq
      %v383 = vshrl.u32 %v382, 7
      %v384 = vsub.s32 0, %v383
      %v385 = vrot.slane %v380, %v384
      %v391 = vunpack.c.l.b16 %v376
      %v392 = vunpack.c.l.b16 %v377
      %v393 = vunpack.c.l.b16 %v378
      %v394 = vunpack.c.l.b16 %v379
      %v395 = vpack.c.b16 %v392, %v391
      %v396 = vpack.c.b16 %v394, %v393
      %vm399 = vcmask 261120
      %v401 = vsel %vm399, %v375, 0
      %403 = vmatprep.subr.bf16.mxu0 0
      %404 = vmatpush1.bf16.msra.mxu0 %v395
      %405 = vmatprep.subr.bf16.mxu0 0
      %406 = vmatpush1.bf16.msra.mxu0 %v396
      %407 = vmatprep.subr.bf16.mxu0 0
      %408 = vmatpush1.bf16.msra.mxu0 0
      %409 = vmatprep.subr.bf16.mxu0 0
      %410 = vmatpush1.bf16.msra.mxu0 0
      %411 = vmatprep.subr.bf16.mxu0 0
      %412 = vmatpush1.bf16.msra.mxu0 0
      %413 = vmatprep.subr.bf16.mxu0 0
      %414 = vmatpush1.bf16.msra.mxu0 0
      %415 = vmatprep.subr.bf16.mxu0 0
      %416 = vmatpush1.bf16.msra.mxu0 0
      %417 = vmatprep.subr.bf16.mxu0 0
      %418 = vmatpush1.bf16.msra.mxu0 0
      %419 = vmatprep.subr.bf16.mxu0 0
      %420 = vmatpush1.bf16.msra.mxu0 0
      %421 = vmatprep.subr.bf16.mxu0 0
      %422 = vmatpush1.bf16.msra.mxu0 0
      %423 = vmatprep.subr.bf16.mxu0 0
      %424 = vmatpush1.bf16.msra.mxu0 0
      %425 = vmatprep.subr.bf16.mxu0 0
      %426 = vmatpush1.bf16.msra.mxu0 0
      %427 = vmatprep.subr.bf16.mxu0 0
      %428 = vmatpush1.bf16.msra.mxu0 0
      %429 = vmatprep.subr.bf16.mxu0 0
      %430 = vmatpush1.bf16.msra.mxu0 0
      %431 = vmatprep.subr.bf16.mxu0 0
      %432 = vmatpush1.bf16.msra.mxu0 0
      %433 = vmatprep.subr.bf16.mxu0 0
      %434 = vmatpush1.bf16.msra.mxu0 0
      %435 = vmatprep.mubr.bf16.mxu0 0
      %436 = vmatmul.mubr.bf16.gmra.mrb[0].mxu0 %v401
      %v437 = vpop.f32.mrb[0].mxu0
      %v438 = vadd.f32 %v385, %v437
      %v439 = vpop.f32.mrb[0].mxu0
      %v440 = vpop.f32.mrb[0].mxu0
      %v441 = vpop.f32.mrb[0].mxu0
      %442 = vdwg.mxu0
      %v443 = vpack.c.bf16 %v438, %v438
      %444 = vst [vmem:[%s364] sm:$0xf] %v443
      %445 = vmax.xlane.f32.xlu0 %v438
      %v446 = vpop.xlane.xlu0 %445
      %p447 = scmp.eq.s32.totalorder %s25, 0
      // Predicated region
      $region41: #{ctc_forward.2} parent=39 // pred_check
        %p448 = pneg %p447
      $region42: #{ctc_forward.2} parent=39 // pred_check_branch
        %450 = sbr.rel (%p448) target = $region44
      $region43: #{ctc_forward.2} parent=39 // pred_region
        %vm451 = vcmask 7168
        %452 = vst.msk [vmem:[#allocation2] sm:$0xff] %vm451, -inf
        %453 = vst.msk [vmem:[#allocation3] sm:$0xff] %vm451, 0.0
      $region44: #{ctc_forward.2} parent=39 // pred_fallthru
        _
      %v454 = vld [vmem:[#allocation2] sm:$0xff]
      %v455 = vmax.f32 %v454, %v446
      %v456 = vld [vmem:[#allocation3] sm:$0xff]
      %v457 = vsub.f32 %v454, %v455
      %v458 = vmul.f32 %v457, 1.442695
      %v459 = vpow.pop %v458
      %v460 = vmul.f32 %v456, %v459
      %462 = vset.pattern.permute.xlu0 0
      %463 = vperm.xlu0 %462, %v455
      %v464 = vpop.permute.xlu0 %463
      %v466 = vsub.f32 %v438, %v464
      %v467 = vmul.f32 %v466, 1.442695
      %v468 = vpow.pop %v467
      %469 = vadd.xlane.f32.xlu0 %v468
      %v470 = vpop.xlane.xlu0 %469
      %v471 = vadd.f32 %v460, %v470
      %vm472 = vcmask 7168
      %473 = vst.msk [vmem:[#allocation3] sm:$0xff] %vm472, %v471
      %474 = vst.msk [vmem:[#allocation2] sm:$0xff] %vm472, %v455
      // Predicated region
      $region45: #{ctc_forward.2} parent=39 // pred_check
        %p475 = pneg %p447
      $region46: #{ctc_forward.2} parent=39 // pred_check_branch
        %477 = sbr.rel (%p475) target = $region48
      $region47: #{ctc_forward.2} parent=39 // pred_region
        %v478 = vld [vmem:[#allocation2] sm:$0xff]
        %v479 = vld [vmem:[#allocation3] sm:$0xff]
        %v480 = vlog2.pop %v479
        %v481 = vmul.f32 %v480, 0.6931472
        %v482 = vadd.f32 %v478, %v481
        %v483 = vld [vmem:[%s352] sm:$0xf]
        %v484 = vld [vmem:[%s352 + $0x4] sm:$0xf]
        %v485 = vld [vmem:[%s352 + $0x8] sm:$0xf]
        %v486 = vld [vmem:[%s352 + $0xc] sm:$0xf]
        %v487 = vld [vmem:[%s355] sm:$0x1]
        %v489 = vlaneseq
        %v490 = vshrl.u32 %v489, 7
        %v491 = vsub.s32 0, %v490
        %v492 = vrot.slane %v487, %v491
        %v498 = vunpack.c.l.b16 %v483
        %v499 = vunpack.c.l.b16 %v484
        %v500 = vunpack.c.l.b16 %v485
        %v501 = vunpack.c.l.b16 %v486
        %v502 = vpack.c.b16 %v499, %v498
        %v503 = vpack.c.b16 %v501, %v500
        %506 = vmatprep.subr.bf16.mxu0 0
        %507 = vmatpush1.bf16.msra.mxu0 %v502
        %508 = vmatprep.subr.bf16.mxu0 0
        %509 = vmatpush1.bf16.msra.mxu0 %v503
        %510 = vmatprep.subr.bf16.mxu0 0
        %511 = vmatpush1.bf16.msra.mxu0 0
        %512 = vmatprep.subr.bf16.mxu0 0
        %513 = vmatpush1.bf16.msra.mxu0 0
        %514 = vmatprep.subr.bf16.mxu0 0
        %515 = vmatpush1.bf16.msra.mxu0 0
        %516 = vmatprep.subr.bf16.mxu0 0
        %517 = vmatpush1.bf16.msra.mxu0 0
        %518 = vmatprep.subr.bf16.mxu0 0
        %519 = vmatpush1.bf16.msra.mxu0 0
        %520 = vmatprep.subr.bf16.mxu0 0
        %521 = vmatpush1.bf16.msra.mxu0 0
        %522 = vmatprep.subr.bf16.mxu0 0
        %523 = vmatpush1.bf16.msra.mxu0 0
        %524 = vmatprep.subr.bf16.mxu0 0
        %525 = vmatpush1.bf16.msra.mxu0 0
        %526 = vmatprep.subr.bf16.mxu0 0
        %527 = vmatpush1.bf16.msra.mxu0 0
        %528 = vmatprep.subr.bf16.mxu0 0
        %529 = vmatpush1.bf16.msra.mxu0 0
        %530 = vmatprep.subr.bf16.mxu0 0
        %531 = vmatpush1.bf16.msra.mxu0 0
        %532 = vmatprep.subr.bf16.mxu0 0
        %533 = vmatpush1.bf16.msra.mxu0 0
        %534 = vmatprep.subr.bf16.mxu0 0
        %535 = vmatpush1.bf16.msra.mxu0 0
        %536 = vmatprep.subr.bf16.mxu0 0
        %537 = vmatpush1.bf16.msra.mxu0 0
        %538 = vmatprep.mubr.bf16.mxu0 0
        %539 = vmatmul.mubr.bf16.gmra.mrb[0].mxu0 %v401
        %v540 = vpop.f32.mrb[0].mxu0
        %v541 = vadd.f32 %v492, %v540
        %v542 = vpop.f32.mrb[0].mxu0
        %v543 = vpop.f32.mrb[0].mxu0
        %v544 = vpop.f32.mrb[0].mxu0
        %545 = vdwg.mxu0
        %547 = vset.pattern.permute.xlu0 0
        %548 = vperm.xlu0 %547, %v482
        %v549 = vpop.permute.xlu0 %548
        %v551 = vsub.f32 %v541, %v549
        %552 = vst [vmem:[%s373] sm:$0xff] %v551
      $region48: #{ctc_forward.2} parent=39 // pred_fallthru
        _
      %s553 = sadd.s32 %s23, %s25
      %p554 = scmp.lt.s32.totalorder %s24, 0
      %s555 = scalar_select %p554, %s24, 0
      %p556 = scmp.lt.s32.totalorder %s553, 1
      %s557 = scalar_select %p556, %s553, 1
      %s558 = smul.addr %s555, 2
      %s559 = sadd.s32 %s557, %s558
      %s560 = smul.addr %s559, 4
      %s561 = scalar_lea.vmem %s5, %s560
      %p562 = scmp.lt.s32.totalorder %s24, 0
      %s563 = scalar_select %p562, %s24, 0
      %p564 = scmp.lt.s32.totalorder %s23, 1
      %s565 = scalar_select %p564, %s23, 1
      %s566 = smul.addr %s563, 2
      %s567 = sadd.s32 %s565, %s566
      %s568 = smul.addr %s567, 8
      %s569 = scalar_lea.vmem %s6, %s568
      // Predicated region
      $region49: #{ctc_forward.2} parent=39 // pred_check
        %p570 = pneg %p191
      $region50: #{ctc_forward.2} parent=39 // pred_check_branch
        %572 = sbr.rel (%p570) target = $region52
      $region51: #{ctc_forward.2} parent=39 // pred_region
        %s573 = sadd.s32 %s23, %s25
      $region52: #{ctc_forward.2} parent=39 // pred_fallthru
        _
      // Predicated region
      $region53: #{ctc_forward.2} parent=39 // pred_check
        %p574 = pneg %p219
      $region54: #{ctc_forward.2} parent=39 // pred_check_branch
        %576 = sbr.rel (%p574) target = $region56
      $region55: #{ctc_forward.2} parent=39 // pred_region
        _
      $region56: #{ctc_forward.2} parent=39 // pred_fallthru
        _
    $region40: #{ctc_forward.2} parent=5 // pred_fallthru
      _
    %p577 = scmp.le.s32.totalorder 2, %s13
    // Predicated region
    $region57: #{ctc_forward.2} parent=5 // pred_check
      %p578 = pneg %p577
    $region58: #{ctc_forward.2} parent=5 // pred_check_branch
      %580 = sbr.rel (%p578) target = $region60
    $region59: #{ctc_forward.2} parent=5 // pred_region
      %s581 = ssub.s32 %s13, 2
      // Predicated region
      $region61: #{ctc_forward.2} parent=59 // pred_check
        %p582 = pneg %p197
      $region62: #{ctc_forward.2} parent=59 // pred_check_branch
        %584 = sbr.rel (%p582) target = $region64
      $region63: #{ctc_forward.2} parent=59 // pred_region
        %s585 = sadd.s32 %s26, %s28
        %p586 = scmp.lt.s32.totalorder %s27, 0
        %s587 = scalar_select %p586, %s27, 0
        %p588 = scmp.lt.s32.totalorder %s585, 1
        %s589 = scalar_select %p588, %s585, 1
        %s590 = smul.addr %s587, 2
        %s591 = sadd.s32 %s589, %s590
        %s592 = smul.addr %s591, 4
        %s593 = scalar_lea.vmem %s5, %s592
      $region64: #{ctc_forward.2} parent=59 // pred_fallthru
        _
      // Predicated region
      $region65: #{ctc_forward.2} parent=59 // pred_check
        %p594 = pneg %p225
      $region66: #{ctc_forward.2} parent=59 // pred_check_branch
        %596 = sbr.rel (%p594) target = $region68
      $region67: #{ctc_forward.2} parent=59 // pred_region
        %p597 = scmp.lt.s32.totalorder %s27, 0
        %s598 = scalar_select %p597, %s27, 0
        %p599 = scmp.lt.s32.totalorder %s26, 1
        %s600 = scalar_select %p599, %s26, 1
        %s601 = smul.addr %s598, 2
        %s602 = sadd.s32 %s600, %s601
        %s603 = smul.addr %s602, 8
        %s604 = scalar_lea.vmem %s6, %s603
      $region68: #{ctc_forward.2} parent=59 // pred_fallthru
        _
    $region60: #{ctc_forward.2} parent=5 // pred_fallthru
      _
  $region6: #{ctc_forward.2} parent=0 // loop_footer
    %s17 = sadd.s32 1, %s13
  $region7: #{ctc_forward.2} parent=0 // loop_footer_branch
    %12 = sbr.rel target = $region3
  $region8: #{ctc_forward.2} parent=0 // loop_exit
    _

// kernel: ctc_forward.3
$region0: #{ctc_forward.3}
  #allocation0 [shape = 'u32[]', space=smem, size = 0x4, offset = 0x4, fixed_abs, tag = 'smem constant byte address 0x4 - core index']
  #allocation1 [shape = 'u32[144,128]{1,0:T(1,128)}', space=vmem, size = 0x12000, scoped, tag = 'internal scratch']
  %s0 = inlined_call_operand.vmem [shape: s32[2,1], index: 0, kind: input, shape index: {}]
  %s1 = inlined_call_operand.vmem [shape: f32[2,128], index: 1, kind: input, shape index: {}]
  %s2 = inlined_call_operand.vmem [shape: f32[2,128], index: 2, kind: input, shape index: {}]
  %s3 = inlined_call_operand.vmem [shape: f32[2,128], index: 3, kind: input, shape index: {}]
  %s4 = inlined_call_operand.vmem [shape: f32[8,2,128], index: 4, kind: input, shape index: {}]
  %s5 = inlined_call_operand.vmem [shape: f32[2,128], index: 5, kind: output, shape index: {}]
  %s6 = sld [smem:[#allocation0]]
  $region52: #{ctc_forward.3} parent=0
    _
  %s8 = ssub.s32 1, %s6
  %s9 = scalar_select 0, %s8, %s6
  // Predicated region
  $region2: #{ctc_forward.3} parent=0 // pred_check
    _
  $region3: #{ctc_forward.3} parent=0 // pred_check_branch
    %11 = sbr.rel (0) target = $region5
  $region4: #{ctc_forward.3} parent=0 // pred_region
    _
  $region5: #{ctc_forward.3} parent=0 // pred_fallthru
    _
  // Predicated region
  $region6: #{ctc_forward.3} parent=0 // pred_check
    _
  $region7: #{ctc_forward.3} parent=0 // pred_check_branch
    %13 = sbr.rel (0) target = $region9
  $region8: #{ctc_forward.3} parent=0 // pred_region
    _
  $region9: #{ctc_forward.3} parent=0 // pred_fallthru
    _
  // Predicated region
  $region10: #{ctc_forward.3} parent=0 // pred_check
    _
  $region11: #{ctc_forward.3} parent=0 // pred_check_branch
    %15 = sbr.rel (0) target = $region13
  $region12: #{ctc_forward.3} parent=0 // pred_region
    _
  $region13: #{ctc_forward.3} parent=0 // pred_fallthru
    _
  // Predicated region
  $region14: #{ctc_forward.3} parent=0 // pred_check
    _
  $region15: #{ctc_forward.3} parent=0 // pred_check_branch
    %17 = sbr.rel (0) target = $region17
  $region16: #{ctc_forward.3} parent=0 // pred_region
    _
  $region17: #{ctc_forward.3} parent=0 // pred_fallthru
    _
  // Predicated region
  $region18: #{ctc_forward.3} parent=0 // pred_check
    _
  $region19: #{ctc_forward.3} parent=0 // pred_check_branch
    %19 = sbr.rel (0) target = $region21
  $region20: #{ctc_forward.3} parent=0 // pred_region
    _
  $region21: #{ctc_forward.3} parent=0 // pred_fallthru
    _
  %v20 = vld [vmem:[%s1] sm:$0x3]
  %vm21 = vcmp.gt.f32.partialorder %v20, 0.5
  %v22 = vld [vmem:[%s2] sm:$0x3]
  %vm23 = vcmp.gt.f32.partialorder %v22, 0.5
  %v24 = vld [vmem:[%s0] sm:$0x3]
  %v25 = vlaneseq
  %v26 = vand.u32 %v25, 127
  %vm27 = vcmp.ge.s32.totalorder %v26, 1
  %p28 = scmp.eq.s32.totalorder 0, 0
  // Predicated region
  $region22: #{ctc_forward.3} parent=0 // pred_check
    %p29 = pneg %p28
  $region23: #{ctc_forward.3} parent=0 // pred_check_branch
    %31 = sbr.rel (%p29) target = $region25
  $region24: #{ctc_forward.3} parent=0 // pred_region
    %v32 = vld [vmem:[%s3] sm:$0x3]
    %vm33 = vcmp.gt.f32.partialorder %v32, 0.5
    %v34 = vld [vmem:[%s4] sm:$0x3]
    %v35 = vsel %vm33, %v34, -1e+30
    loop: start=1, step=1, limit=8
    $region26: #{ctc_forward.3} parent=24 // loop_pre_header
      _
    $region27: #{ctc_forward.3} parent=24 // loop_header
      %s37 = sphi 1, %s41
      %p38 = scmp.ge.s32.totalorder %s37, 8
      %v42 = vphi %v35, %v79
    $region28: #{ctc_forward.3} parent=24 // loop_header_branch
      %40 = sbr.rel (%p38) target = $region32
    $region29: #{ctc_forward.3} parent=24 // loop_body
      %s43 = smul.u32 0, 8
      %s44 = sadd.s32 %s43, %s37
      %45 = vrot.lane.b32.xlu0 %v42, 1
      %v46 = vpop.permute.xlu0 %45
      %v47 = vsel %vm27, %v46, -1e+30
      %48 = vrot.lane.b32.xlu0 %v42, 2
      %v49 = vpop.permute.xlu0 %48
      %v50 = vsel %vm23, %v49, -1e+30
      %v51 = vmax.f32 %v47, %v50
      %v52 = vmax.f32 %v42, %v51
      %v53 = vsub.f32 %v42, %v52
      %v54 = vmul.f32 %v53, 1.442695
      %v55 = vpow.pop %v54
      %v56 = vsub.f32 %v47, %v52
      %v57 = vmul.f32 %v56, 1.442695
      %v58 = vpow.pop %v57
      %v59 = vadd.f32 %v55, %v58
      %v60 = vsub.f32 %v50, %v52
      %v61 = vmul.f32 %v60, 1.442695
      %v62 = vpow.pop %v61
      %v63 = vadd.f32 %v59, %v62
      %v64 = vlog2.pop %v63
      %v65 = vmul.f32 %v64, 0.6931472
      %v66 = vadd.f32 %v52, %v65
      %s67 = smul.u32 %s37, 2
      %s68 = scalar_lea.vmem %s4, %s67
      %v69 = vld [vmem:[%s68] sm:$0x3]
      %v70 = vadd.f32 %v66, %v69
      %v71 = vsel %vm21, %v70, -1e+30
      %v72 = vstv %s44
      %vm73 = vcmp.lt.s32.totalorder %v72, %v24
      %v74 = vsel %vm73, 1, 0
      %75 = vset.pattern.permute.xlu0 0
      %76 = vperm.xlu0 %75, %v74
      %v77 = vpop.permute.xlu0 %76
      %vm78 = vcmp.eq.s32.totalorder %v77, 1
      %v79 = vsel %vm78, %v71, %v42
    $region30: #{ctc_forward.3} parent=24 // loop_footer
      %s41 = sadd.s32 1, %s37
    $region31: #{ctc_forward.3} parent=24 // loop_footer_branch
      %36 = sbr.rel target = $region27
    $region32: #{ctc_forward.3} parent=24 // loop_exit
      _
    %80 = vst [vmem:[%s5] sm:$0x3] %v42
  $region25: #{ctc_forward.3} parent=0 // pred_fallthru
    _
  %p81 = scmp.gt.s32.totalorder 0, 0
  // Predicated region
  $region33: #{ctc_forward.3} parent=0 // pred_check
    %p82 = pneg %p81
  $region34: #{ctc_forward.3} parent=0 // pred_check_branch
    %84 = sbr.rel (%p82) target = $region36
  $region35: #{ctc_forward.3} parent=0 // pred_region
    %v85 = vld [vmem:[%s5] sm:$0x3]
    loop: start=0, step=1, limit=8
    $region37: #{ctc_forward.3} parent=35 // loop_pre_header
      _
    $region38: #{ctc_forward.3} parent=35 // loop_header
      %s87 = sphi 0, %s91
      %p88 = scmp.ge.s32.totalorder %s87, 8
      %v92 = vphi %v85, %v129
    $region39: #{ctc_forward.3} parent=35 // loop_header_branch
      %90 = sbr.rel (%p88) target = $region43
    $region40: #{ctc_forward.3} parent=35 // loop_body
      %s93 = smul.u32 0, 8
      %s94 = sadd.s32 %s93, %s87
      %95 = vrot.lane.b32.xlu0 %v92, 1
      %v96 = vpop.permute.xlu0 %95
      %v97 = vsel %vm27, %v96, -1e+30
      %98 = vrot.lane.b32.xlu0 %v92, 2
      %v99 = vpop.permute.xlu0 %98
      %v100 = vsel %vm23, %v99, -1e+30
      %v101 = vmax.f32 %v97, %v100
      %v102 = vmax.f32 %v92, %v101
      %v103 = vsub.f32 %v92, %v102
      %v104 = vmul.f32 %v103, 1.442695
      %v105 = vpow.pop %v104
      %v106 = vsub.f32 %v97, %v102
      %v107 = vmul.f32 %v106, 1.442695
      %v108 = vpow.pop %v107
      %v109 = vadd.f32 %v105, %v108
      %v110 = vsub.f32 %v100, %v102
      %v111 = vmul.f32 %v110, 1.442695
      %v112 = vpow.pop %v111
      %v113 = vadd.f32 %v109, %v112
      %v114 = vlog2.pop %v113
      %v115 = vmul.f32 %v114, 0.6931472
      %v116 = vadd.f32 %v102, %v115
      %s117 = smul.u32 %s87, 2
      %s118 = scalar_lea.vmem %s4, %s117
      %v119 = vld [vmem:[%s118] sm:$0x3]
      %v120 = vadd.f32 %v116, %v119
      %v121 = vsel %vm21, %v120, -1e+30
      %v122 = vstv %s94
      %vm123 = vcmp.lt.s32.totalorder %v122, %v24
      %v124 = vsel %vm123, 1, 0
      %125 = vset.pattern.permute.xlu0 0
      %126 = vperm.xlu0 %125, %v124
      %v127 = vpop.permute.xlu0 %126
      %vm128 = vcmp.eq.s32.totalorder %v127, 1
      %v129 = vsel %vm128, %v121, %v92
    $region41: #{ctc_forward.3} parent=35 // loop_footer
      %s91 = sadd.s32 1, %s87
    $region42: #{ctc_forward.3} parent=35 // loop_footer_branch
      %86 = sbr.rel target = $region38
    $region43: #{ctc_forward.3} parent=35 // loop_exit
      _
    %130 = vst [vmem:[%s5] sm:$0x3] %v92
  $region36: #{ctc_forward.3} parent=0 // pred_fallthru
    _
  // Predicated region
  $region44: #{ctc_forward.3} parent=0 // pred_check
    _
  $region45: #{ctc_forward.3} parent=0 // pred_check_branch
    %132 = sbr.rel (0) target = $region47
  $region46: #{ctc_forward.3} parent=0 // pred_region
    _
  $region47: #{ctc_forward.3} parent=0 // pred_fallthru
    _
  // Predicated region
  $region48: #{ctc_forward.3} parent=0 // pred_check
    _
  $region49: #{ctc_forward.3} parent=0 // pred_check_branch
    %134 = sbr.rel (0) target = $region51
  $region50: #{ctc_forward.3} parent=0 // pred_region
    _
  $region51: #{ctc_forward.3} parent=0 // pred_fallthru
    _

</llo_original>
